<compile_context>
chip_gen: v5e
topology: v5e:2x2
jax: 0.10.0
libtpu: 0.0.40
codegen_flags: <defaults>
</compile_context>

<pallas_src>
import math
from functools import lru_cache, partial

import jax
import jax.numpy as jnp
from jax import lax
from jax.experimental import pallas as pl
from jax.experimental.pallas import tpu as pltpu

F32 = jnp.float32
BF16 = jnp.bfloat16
BN_EPS = 1e-5


def _vmem_limit():
    phys = 64 * 1024 * 1024            # conservative default (v7x per-TC VMEM)
    try:
        info = pltpu.get_tpu_info()
        phys = int(getattr(info, "vmem_capacity_bytes", phys)) or phys
    except Exception:
        pass
    # ~3/4 of physical, capped at 100 MiB (v5e/v6e have 128 MiB physical)
    return int(min(3 * phys // 4, 100 * 1024 * 1024))


VMEM_LIMIT = _vmem_limit()


# ----------------------------------------------------------------------------
# tile pickers (block dims must be divisible by (8,128) or equal the full dim)
# ----------------------------------------------------------------------------
def _tile_rows(n, cap):
    if n <= cap:
        return n
    t = (cap // 8) * 8
    while t >= 8:
        if n % t == 0:
            return t
        t -= 8
    return n


def _tile_lanes(n, cap):
    if n <= cap:
        return n
    t = (cap // 128) * 128
    while t >= 128:
        if n % t == 0:
            return t
        t -= 128
    return n


# ----------------------------------------------------------------------------
# Kernel 1: tiled matmul + bias (+ optional ReLU)
#   Linear, 1x1x1 conv, center-tap 3x3x3 conv, small-spatial im2col conv
# ----------------------------------------------------------------------------
def _matmul_kernel_simple(x_ref, w_ref, b_ref, o_ref, *, relu):
    y = jnp.dot(x_ref[...], w_ref[...], preferred_element_type=jnp.float32)
    y = y + b_ref[...].astype(jnp.float32)
    if relu:
        y = jnp.maximum(y, 0.0)
    o_ref[...] = y.astype(o_ref.dtype)


def _matmul_kernel_acc(x_ref, w_ref, b_ref, o_ref, acc_ref, *, relu, nk):
    k = pl.program_id(2)

    @pl.when(k == 0)
    def _():
        acc_ref[...] = jnp.zeros_like(acc_ref)

    acc_ref[...] += jnp.dot(x_ref[...], w_ref[...],
                            preferred_element_type=jnp.float32)

    @pl.when(k == nk - 1)
    def _():
        y = acc_ref[...] + b_ref[...].astype(jnp.float32)
        if relu:
            y = jnp.maximum(y, 0.0)
        o_ref[...] = y.astype(o_ref.dtype)


@lru_cache(maxsize=None)
def _build_matmul(M, K, N, relu, out_dtype_name):
    out_dtype = jnp.dtype(out_dtype_name)
    small_m = M <= 64                       # weight-streaming layers: bigger tiles
    tn = _tile_lanes(N, 1024 if small_m else 512)
    tk = _tile_lanes(K, 4096 if small_m else 2048)
    row_cap = max(256, min(2048, (4 * 1024 * 1024) // max(1, tk * 2)))
    tm = _tile_rows(M, row_cap)
    nm, nn, nk = M // tm, N // tn, K // tk
    assert nm * tm == M and nn * tn == N and nk * tk == K

    if nk == 1:
        kernel = partial(_matmul_kernel_simple, relu=relu)
        grid = (nm, nn)
        in_specs = [
            pl.BlockSpec((tm, K), lambda i, j: (i, 0)),
            pl.BlockSpec((K, tn), lambda i, j: (0, j)),
            pl.BlockSpec((1, tn), lambda i, j: (0, j)),
        ]
        out_spec = pl.BlockSpec((tm, tn), lambda i, j: (i, j))
        scratch = []
        sem = ("parallel", "parallel")
    else:
        kernel = partial(_matmul_kernel_acc, relu=relu, nk=nk)
        grid = (nm, nn, nk)
        in_specs = [
            pl.BlockSpec((tm, tk), lambda i, j, k: (i, k)),
            pl.BlockSpec((tk, tn), lambda i, j, k: (k, j)),
            pl.BlockSpec((1, tn), lambda i, j, k: (0, j)),
        ]
        out_spec = pl.BlockSpec((tm, tn), lambda i, j, k: (i, j))
        scratch = [pltpu.VMEM((tm, tn), jnp.float32)]
        sem = ("parallel", "parallel", "arbitrary")

    call = pl.pallas_call(
        kernel,
        out_shape=jax.ShapeDtypeStruct((M, N), out_dtype),
        grid_spec=pltpu.PrefetchScalarGridSpec(
            num_scalar_prefetch=0,
            grid=grid,
            in_specs=in_specs,
            out_specs=out_spec,
            scratch_shapes=scratch,
        ),
        compiler_params=pltpu.CompilerParams(
            dimension_semantics=sem,
            vmem_limit_bytes=VMEM_LIMIT,
        ),
    )
    return jax.jit(call)


def matmul_bias(x, w, b, relu=False, out_dtype=BF16):
    M, K = x.shape
    K2, N = w.shape
    assert K == K2
    f = _build_matmul(M, K, N, bool(relu), jnp.dtype(out_dtype).name)
    return f(x.astype(BF16), w.astype(BF16), jnp.asarray(b, F32).reshape(1, N))


# ----------------------------------------------------------------------------
# 1x1x1 conv
# ----------------------------------------------------------------------------
def conv1x1(x, w, b):
    B, D, H, W, Cin = x.shape
    Cout = w.shape[1]
    if Cout == 1 and (W * Cin) % 128 == 0:
        # lane-dense formulation: block-diagonal weight so rows carry W*Cin lanes
        # and the output row carries W lanes (instead of 1 masked lane).
        wd = jnp.kron(jnp.eye(W, dtype=w.dtype), w)          # (W*Cin, W)
        bv = jnp.broadcast_to(jnp.asarray(b, F32).reshape(1), (W,))
        y = matmul_bias(x.reshape(B * D * H, W * Cin), wd, bv)
        return y.reshape(B, D, H, W, 1)
    y = matmul_bias(x.reshape(B * D * H * W, Cin), w, b)
    return y.reshape(B, D, H, W, Cout)


# ----------------------------------------------------------------------------
# Kernel 2: direct 3x3x3 conv (stride 1, pad 1) for large-spatial layers.
# grid (B, D, kd): one padded input depth plane per step; 9-tap column block built
# in a VMEM scratch (K = 9*Cin), accumulated over kd in an f32 scratch.
# ----------------------------------------------------------------------------
def _dconv_kernel(x_ref, w_ref, b_ref, o_ref, cols_ref, acc_ref, *, H, W, Cin):
    kd = pl.program_id(2)

    @pl.when(kd == 0)
    def _():
        acc_ref[...] = jnp.zeros_like(acc_ref)

    for kh in range(3):
        for kw in range(3):
            t = kh * 3 + kw
            cols_ref[:, t * Cin:(t + 1) * Cin] = (
                x_ref[kh:kh + H, kw:kw + W, :].reshape(H * W, Cin))

    acc_ref[...] += jnp.dot(cols_ref[...], w_ref[...],
                            preferred_element_type=jnp.float32)

    @pl.when(kd == 2)
    def _():
        y = acc_ref[...] + b_ref[...].astype(jnp.float32)
        o_ref[...] = y.reshape(H, W, -1).astype(o_ref.dtype)


@lru_cache(maxsize=None)
def _build_conv_direct(B, D, H, W, Cin, Cout):
    M = H * W
    call = pl.pallas_call(
        partial(_dconv_kernel, H=H, W=W, Cin=Cin),
        out_shape=jax.ShapeDtypeStruct((B, D, H, W, Cout), BF16),
        grid_spec=pltpu.PrefetchScalarGridSpec(
            num_scalar_prefetch=0,
            grid=(B, D, 3),
            in_specs=[
                pl.BlockSpec((None, None, H + 2, W + 2, Cin),
                             lambda b, d, kd: (b, d + kd, 0, 0, 0)),
                pl.BlockSpec((9 * Cin, Cout), lambda b, d, kd: (kd, 0)),
                pl.BlockSpec((1, Cout), lambda b, d, kd: (0, 0)),
            ],
            out_specs=pl.BlockSpec((None, None, H, W, Cout),
                                   lambda b, d, kd: (b, d, 0, 0, 0)),
            scratch_shapes=[pltpu.VMEM((M, 9 * Cin), BF16),
                            pltpu.VMEM((M, Cout), jnp.float32)],
        ),
        compiler_params=pltpu.CompilerParams(
            dimension_semantics=("parallel", "parallel", "arbitrary"),
            vmem_limit_bytes=VMEM_LIMIT,
        ),
    )
    return jax.jit(call)


def _conv_direct(x, w27, b):
    B, D, H, W, Cin = x.shape
    Cout = w27.shape[-1]
    xp = jnp.pad(x, ((0, 0), (1, 1), (1, 1), (1, 1), (0, 0)))
    f = _build_conv_direct(B, D, H, W, Cin, Cout)
    return f(xp, w27.reshape(27 * Cin, Cout).astype(BF16),
             jnp.asarray(b, F32).reshape(1, Cout))


# ----------------------------------------------------------------------------
# Kernel 3: single-channel 3x3x3 conv (final decoder res block @128^3).
# Lane-dense: W=128 maps to lanes, kw shifts via pltpu.roll (XLU) + edge zeroing,
# one (H, W) plane per grid step (f32 accumulator is only 16 vregs).
# ----------------------------------------------------------------------------
def _c1_kernel(x0_ref, x1_ref, x2_ref, w_ref, b_ref, o_ref, *, H, W):
    lane = lax.broadcasted_iota(jnp.int32, (H, W), 1)
    acc = jnp.zeros((H, W), jnp.float32)
    for kd, xr in enumerate((x0_ref, x1_ref, x2_ref)):
        for kh in range(3):
            s = xr[kh:kh + H, :].astype(jnp.float32)                 # (H, W)
            left = jnp.where(lane == 0, 0.0, pltpu.roll(s, 1, axis=1))
            right = jnp.where(lane == W - 1, 0.0, pltpu.roll(s, W - 1, axis=1))
            base = kd * 9 + kh * 3
            acc = (acc + w_ref[base + 0] * left
                       + w_ref[base + 1] * s
                       + w_ref[base + 2] * right)
    o_ref[...] = (acc + b_ref[0]).astype(o_ref.dtype)


@lru_cache(maxsize=None)
def _build_conv_c1(B, D, H, W):
    def in_spec(kd):
        return pl.BlockSpec((None, None, H + 2, W),
                            lambda b, d, _kd=kd: (b, d + _kd, 0, 0))

    call = pl.pallas_call(
        partial(_c1_kernel, H=H, W=W),
        out_shape=jax.ShapeDtypeStruct((B, D, H, W), BF16),
        grid_spec=pltpu.PrefetchScalarGridSpec(
            num_scalar_prefetch=0,
            grid=(B, D),
            in_specs=[in_spec(0), in_spec(1), in_spec(2),
                      pl.BlockSpec(memory_space=pltpu.MemorySpace.SMEM),
                      pl.BlockSpec(memory_space=pltpu.MemorySpace.SMEM)],
            out_specs=pl.BlockSpec((None, None, H, W), lambda b, d: (b, d, 0, 0)),
        ),
        compiler_params=pltpu.CompilerParams(
            dimension_semantics=("parallel", "parallel"),
            vmem_limit_bytes=VMEM_LIMIT,
        ),
    )
    return jax.jit(call)


def _conv3d_c1(x, w27, b):
    B, D, H, W, _ = x.shape
    xp = jnp.pad(x[..., 0], ((0, 0), (1, 1), (1, 1), (0, 0)))   # pad D, H only
    f = _build_conv_c1(B, D, H, W)
    out = f(xp, xp, xp, w27.reshape(27).astype(F32),
            jnp.asarray(b, F32).reshape(1))
    return out[..., None]


# ----------------------------------------------------------------------------
# Remaining 3x3x3 conv paths
# ----------------------------------------------------------------------------
def _conv_center(x, w27, b):
    # spatial 1x1x1: only the center tap touches non-padding input (exact).
    B, D, H, W, Cin = x.shape
    Cout = w27.shape[-1]
    y = matmul_bias(x.reshape(B, Cin), w27[13], b)
    return y.reshape(B, D, H, W, Cout)


def _conv_im2col(x, w27, b):
    # small-spatial layers only: the im2col intermediate stays tiny (< few MB).
    B, D, H, W, Cin = x.shape
    Cout = w27.shape[-1]
    xp = jnp.pad(x, ((0, 0), (1, 1), (1, 1), (1, 1), (0, 0)))
    cols = [xp[:, kd:kd + D, kh:kh + H, kw:kw + W, :]
            for kd in range(3) for kh in range(3) for kw in range(3)]
    col = jnp.concatenate(cols, axis=-1).reshape(B * D * H * W, 27 * Cin)
    y = matmul_bias(col, w27.reshape(27 * Cin, Cout), b)
    return y.reshape(B, D, H, W, Cout)


def conv3d_3x3(x, w27, b):
    """Conv3d(k=3, stride=1, padding=1).  x: (B, D, H, W, Cin) NDHWC bf16."""
    B, D, H, W, Cin = x.shape
    Cout = w27.shape[-1]
    if D == 1 and H == 1 and W == 1:
        return _conv_center(x, w27, b)
    if Cin == 1 and Cout == 1 and W % 128 == 0 and H % 8 == 0:
        return _conv3d_c1(x, w27, b)
    if D * H * W >= 4096 and W % 8 == 0 and H % 8 == 0:
        return _conv_direct(x, w27, b)
    return _conv_im2col(x, w27, b)


# ----------------------------------------------------------------------------
# Kernels 4/5: BatchNorm (training stats) + ReLU (+ residual)
# ----------------------------------------------------------------------------
def _bn_stats_kernel(x_ref, s_ref, q_ref):
    @pl.when(pl.program_id(1) == 0)
    def _():
        s_ref[...] = jnp.zeros_like(s_ref)
        q_ref[...] = jnp.zeros_like(q_ref)

    x = x_ref[...].astype(jnp.float32)
    s_ref[...] += jnp.sum(x, axis=0, keepdims=True)
    q_ref[...] += jnp.sum(x * x, axis=0, keepdims=True)


@lru_cache(maxsize=None)
def _build_bn_stats(R, Lc):
    tr = _tile_rows(R, 1024)
    nblk = R // tr
    P = 2 if nblk % 2 == 0 else 1          # 2-way split for v7x dual-TC
    nj = nblk // P
    call = pl.pallas_call(
        _bn_stats_kernel,
        out_shape=(jax.ShapeDtypeStruct((P, Lc), F32),
                   jax.ShapeDtypeStruct((P, Lc), F32)),
        grid_spec=pltpu.PrefetchScalarGridSpec(
            num_scalar_prefetch=0,
            grid=(P, nj),
            in_specs=[pl.BlockSpec((tr, Lc), lambda p, j: (p * nj + j, 0))],
            out_specs=[pl.BlockSpec((1, Lc), lambda p, j: (p, 0)),
                       pl.BlockSpec((1, Lc), lambda p, j: (p, 0))],
        ),
        compiler_params=pltpu.CompilerParams(
            dimension_semantics=("parallel", "arbitrary"),
            vmem_limit_bytes=VMEM_LIMIT,
        ),
    )
    return jax.jit(call)


def _bn_apply_kernel(x_ref, s_ref, t_ref, o_ref):
    y = jnp.maximum(x_ref[...].astype(jnp.float32) * s_ref[...] + t_ref[...], 0.0)
    o_ref[...] = y.astype(o_ref.dtype)


def _bn_apply_res_kernel(x_ref, s_ref, t_ref, r_ref, o_ref):
    y = jnp.maximum(x_ref[...].astype(jnp.float32) * s_ref[...] + t_ref[...], 0.0)
    y = y + r_ref[...].astype(jnp.float32)
    o_ref[...] = y.astype(o_ref.dtype)


@lru_cache(maxsize=None)
def _build_bn_apply(R, Lc, has_res):
    tr = _tile_rows(R, 1024)
    row = pl.BlockSpec((tr, Lc), lambda i: (i, 0))
    vec = pl.BlockSpec((1, Lc), lambda i: (0, 0))
    in_specs = [row, vec, vec] + ([row] if has_res else [])
    call = pl.pallas_call(
        _bn_apply_res_kernel if has_res else _bn_apply_kernel,
        out_shape=jax.ShapeDtypeStruct((R, Lc), BF16),
        grid_spec=pltpu.PrefetchScalarGridSpec(
            num_scalar_prefetch=0,
            grid=(R // tr,),
            in_specs=in_specs,
            out_specs=row,
        ),
        compiler_params=pltpu.CompilerParams(
            dimension_semantics=("parallel",),
            vmem_limit_bytes=VMEM_LIMIT,
        ),
    )
    return jax.jit(call)


def batchnorm_relu(x, gamma, beta, residual=None):
    """Training-mode BatchNorm3d (batch stats, biased var, eps=1e-5) + ReLU,
    then optional residual add (matches relu(bn(conv(x))) + skip)."""
    B, D, H, W, C = x.shape
    total = B * D * H * W * C
    G = 1 if C >= 128 else max(1, 128 // C)      # fold voxels to keep lanes dense
    Lc = C * G
    assert total % Lc == 0
    R = total // Lc
    x2 = x.reshape(R, Lc)

    s_sum, s_sq = _build_bn_stats(R, Lc)(x2)
    cnt = total // C
    s_sum = s_sum.sum(axis=0).reshape(G, C).sum(0)
    s_sq = s_sq.sum(axis=0).reshape(G, C).sum(0)
    # scalar finalize (mean/var -> scale/shift) stays in plain JAX.
    mean = s_sum / cnt
    var = jnp.maximum(s_sq / cnt - mean * mean, 0.0)
    scale = gamma * lax.rsqrt(var + BN_EPS)
    shift = beta - mean * scale
    s2 = jnp.tile(scale, G).reshape(1, Lc).astype(F32)
    t2 = jnp.tile(shift, G).reshape(1, Lc).astype(F32)

    f = _build_bn_apply(R, Lc, residual is not None)
    if residual is not None:
        y = f(x2, s2, t2, residual.reshape(R, Lc))
    else:
        y = f(x2, s2, t2)
    return y.reshape(B, D, H, W, C)


# ----------------------------------------------------------------------------
# JAX glue: max-pool and trilinear 2x upsample (gather-free)
# ----------------------------------------------------------------------------
def maxpool3d_3s2p1(x):
    # nn.MaxPool3d(3, stride=2, padding=1); padding is -inf (never selected).
    return lax.reduce_window(
        x, jnp.array(-jnp.inf, x.dtype), lax.max,
        (1, 3, 3, 3, 1), (1, 2, 2, 2, 1),
        ((0, 0), (1, 1), (1, 1), (1, 1), (0, 0)))


def _up_axis_2x(v, axis):
    # scale=2, align_corners=False -> fixed [0.25, 0.75] / [0.75, 0.25] blends.
    n = v.shape[axis]
    dt = v.dtype
    vf = v.astype(F32)
    first = lax.slice_in_dim(vf, 0, 1, axis=axis)
    last = lax.slice_in_dim(vf, n - 1, n, axis=axis)
    prev = jnp.concatenate([first, lax.slice_in_dim(vf, 0, n - 1, axis=axis)],
                           axis=axis)
    nxt = jnp.concatenate([lax.slice_in_dim(vf, 1, n, axis=axis), last],
                          axis=axis)
    even = 0.75 * vf + 0.25 * prev
    odd = 0.75 * vf + 0.25 * nxt
    out = jnp.stack([even, odd], axis=axis + 1)
    shape = list(v.shape)
    shape[axis] = 2 * n
    return out.reshape(shape).astype(dt)


def upsample_trilinear_2x(x):
    """nn.Upsample(scale_factor=2, mode='trilinear', align_corners=False)."""
    for ax in (1, 2, 3):                 # separable over depth, height, width
        x = _up_axis_2x(x, ax)
    return x


# ----------------------------------------------------------------------------
# Parameter init (mirrors reset_parameters: U(-1/sqrt(dim0), 1/sqrt(dim0)))
# ----------------------------------------------------------------------------
def _uniform(key, shape, fan0):
    s = 1.0 / math.sqrt(fan0)
    return jax.random.uniform(key, shape, F32, -s, s)


class KeyGen:
    def __init__(self, key):
        self.key = key
        self.i = 0

    def __call__(self):
        self.i += 1
        return jax.random.fold_in(self.key, self.i)


def init_conv3(kg, cin, cout):
    # torch Conv3d weight is (cout, cin, 3, 3, 3) -> stdv = 1/sqrt(cout)
    return {"w": _uniform(kg(), (27, cin, cout), cout).astype(BF16),
            "b": _uniform(kg(), (cout,), cout)}


def init_bn(kg, c):
    return {"gamma": _uniform(kg(), (c,), c), "beta": _uniform(kg(), (c,), c)}


def init_conv_block(kg, cin, cout):
    return {"conv": init_conv3(kg, cin, cout), "bn": init_bn(kg, cout)}


def init_res_block(kg, c):
    return {"c1": init_conv_block(kg, c, c), "c2": init_conv_block(kg, c, c)}


def init_conv1x1(kg, cin, cout):
    return {"w": _uniform(kg(), (cin, cout), cout).astype(BF16),
            "b": _uniform(kg(), (cout,), cout)}


def init_linear(kg, fin, fout):
    # torch Linear weight is (fout, fin) -> stdv = 1/sqrt(fout); stored as (fin, fout)
    return {"w": _uniform(kg(), (fin, fout), fout).astype(BF16),
            "b": _uniform(kg(), (fout,), fout)}


ENC_CH = [1, 32, 64, 128, 256, 512, 1024, 2048]
DEC_CH = [2048, 1024, 512, 256, 128, 64, 32, 1]


def init_encoder(kg):
    return [{"conv": init_conv_block(kg, ENC_CH[i], ENC_CH[i + 1]),
             "res": init_res_block(kg, ENC_CH[i + 1])} for i in range(7)]


def init_decoder(kg, latent_dim):
    return {"linear_up": init_linear(kg, latent_dim, 2048),
            "levels": [{"up": init_conv1x1(kg, DEC_CH[i], DEC_CH[i + 1]),
                        "res": init_res_block(kg, DEC_CH[i + 1])} for i in range(7)]}


def init_vae(key, latent_dim=128):
    kg = KeyGen(key)
    return {"z_mean": init_linear(kg, 2048, latent_dim),
            "z_log_sigma": init_linear(kg, 2048, latent_dim),
            "epsilon": jax.random.normal(kg(), (1, latent_dim), F32),
            "encoder": init_encoder(kg),
            "decoder": init_decoder(kg, latent_dim)}


# ----------------------------------------------------------------------------
# Forward passes
# ----------------------------------------------------------------------------
def conv_block_fwd(x, p):                      # Conv3d + BN + ReLU
    y = conv3d_3x3(x, p["conv"]["w"], p["conv"]["b"])
    return batchnorm_relu(y, p["bn"]["gamma"], p["bn"]["beta"])


def res_block_fwd(x, p):                       # (Conv-BN-ReLU-Conv-BN-ReLU) + x
    y = conv_block_fwd(x, p["c1"])
    y = conv3d_3x3(y, p["c2"]["conv"]["w"], p["c2"]["conv"]["b"])
    return batchnorm_relu(y, p["c2"]["bn"]["gamma"], p["c2"]["bn"]["beta"],
                          residual=x)


def up_conv_fwd(x, p):                         # 1x1x1 conv then trilinear 2x
    return upsample_trilinear_2x(conv1x1(x, p["w"], p["b"]))


def encoder_fwd(x, params):
    for lvl in params:
        x = conv_block_fwd(x, lvl["conv"])
        x = res_block_fwd(x, lvl["res"])
        x = maxpool3d_3s2p1(x)
    return x


def decoder_fwd(z, params):
    B = z.shape[0]
    h = matmul_bias(z.astype(BF16), params["linear_up"]["w"],
                    params["linear_up"]["b"], relu=True)
    x = h.reshape(B, 1, 1, 1, 2048)            # torch .view(-1, 2048, 1, 1, 1), NDHWC
    for lvl in params["levels"]:
        x = up_conv_fwd(x, lvl["up"])
        x = res_block_fwd(x, lvl["res"])
    return x


def vae_fwd(x_ncdhw, params):
    # external interface is NCDHW (like PyTorch); internal is NDHWC bf16.
    x = jnp.transpose(x_ncdhw, (0, 2, 3, 4, 1)).astype(BF16)
    h = encoder_fwd(x, params["encoder"])                       # (B, 1, 1, 1, 2048)
    flat = h.reshape(h.shape[0], -1)                            # (B, 2048)

    # merged latent head: one matmul for z_mean and z_log_sigma
    L = params["z_mean"]["w"].shape[1]
    zw = jnp.concatenate([params["z_mean"]["w"], params["z_log_sigma"]["w"]], axis=1)
    zb = jnp.concatenate([params["z_mean"]["b"], params["z_log_sigma"]["b"]])
    zz = matmul_bias(flat, zw, zb, out_dtype=F32)               # (B, 2L)
    z_mean, z_log_sigma = zz[:, :L], zz[:, L:]

    z = z_mean + jnp.exp(z_log_sigma) * params["epsilon"]
    y = decoder_fwd(z, params["decoder"])                       # (B, 128,128,128, 1)
    y_ncdhw = jnp.transpose(y, (0, 4, 1, 2, 3)).astype(F32)
    return y_ncdhw, z_mean, z_log_sigma


# ----------------------------------------------------------------------------
if __name__ == "__main__":
    key = jax.random.PRNGKey(0)
    params = init_vae(jax.random.fold_in(key, 1), latent_dim=128)

    # Smallest input whose encoder reaches 1x1x1 spatial so flatten() yields 2048.
    x = jax.random.normal(jax.random.fold_in(key, 2), (2, 1, 8, 8, 8), F32)

    fwd = jax.jit(vae_fwd)
    y, z_mean, z_log_sigma = fwd(x, params)
    jax.block_until_ready((y, z_mean, z_log_sigma))

    assert y.shape == (2, 1, 128, 128, 128), y.shape
    assert z_mean.shape == (2, 128) and z_log_sigma.shape == (2, 128)
    assert bool(jnp.all(jnp.isfinite(y)))
    print("KERNEL_OK")
</pallas_src>

<mosaic_0001>
module attributes {stable_mosaic.version = 11 : i64} {
  func.func @_matmul_kernel_simple(%arg0: i32, %arg1: i32, %arg2: memref<1024x27xbf16, #tpu.memory_space<vmem>>, %arg3: memref<27x32xbf16, #tpu.memory_space<vmem>>, %arg4: memref<1x32xf32, #tpu.memory_space<vmem>>, %arg5: memref<1024x32xbf16, #tpu.memory_space<vmem>>) attributes {dimension_semantics = [#tpu.dimension_semantics<parallel>, #tpu.dimension_semantics<parallel>], iteration_bounds = array<i64: 1, 1>, scalar_prefetch = 0 : i64, scratch_operands = 0 : i64, tpu.core_type = #tpu.core_type<tc>, window_params = [{transform_indices = @transform_0, window_bounds = array<i64: 1024, 27>}, {transform_indices = @transform_1, window_bounds = array<i64: 27, 32>}, {transform_indices = @transform_2, window_bounds = array<i64: 1, 32>}, {transform_indices = @transform_3, window_bounds = array<i64: 1024, 32>}]} {
    %c0 = arith.constant 0 : index
    %c0_0 = arith.constant 0 : index
    %0 = vector.load %arg2[%c0, %c0_0] : memref<1024x27xbf16, #tpu.memory_space<vmem>>, vector<1024x27xbf16>
    %c0_1 = arith.constant 0 : index
    %c0_2 = arith.constant 0 : index
    %1 = vector.load %arg3[%c0_1, %c0_2] : memref<27x32xbf16, #tpu.memory_space<vmem>>, vector<27x32xbf16>
    %cst = arith.constant dense<0.000000e+00> : vector<1024x32xf32>
    %2 = tpu.matmul %0, %1, %cst {dimension_numbers = #tpu.dot_dimension_numbers<[1], [0], [0], [1], [0, 0, 1, 1], [], []>} : vector<1024x27xbf16>, vector<27x32xbf16>, vector<1024x32xf32> -> vector<1024x32xf32>
    %c0_3 = arith.constant 0 : index
    %c0_4 = arith.constant 0 : index
    %3 = vector.load %arg4[%c0_3, %c0_4] : memref<1x32xf32, #tpu.memory_space<vmem>>, vector<1x32xf32>
    %4 = vector.broadcast %3 : vector<1x32xf32> to vector<1024x32xf32>
    %5 = arith.addf %2, %4 : vector<1024x32xf32>
    %6 = arith.truncf %5 : vector<1024x32xf32> to vector<1024x32xbf16>
    %c0_5 = arith.constant 0 : index
    %c0_6 = arith.constant 0 : index
    %7 = vector.load %arg5[%c0_5, %c0_6] : memref<1024x32xbf16, #tpu.memory_space<vmem>>, vector<1024x32xbf16>
    tpu.vector_store %arg5[%c0_5, %c0_6], %6 {strides = array<i32>} : memref<1024x32xbf16, #tpu.memory_space<vmem>>, vector<1024x32xbf16>,
    return
  }
  func.func @transform_0(%arg0: i32, %arg1: i32) -> (i32, i32) {
    %c0_i32 = arith.constant 0 : i32
    %c0_i32_0 = arith.constant 0 : i32
    return %arg0, %c0_i32 : i32, i32
  }
  func.func @transform_1(%arg0: i32, %arg1: i32) -> (i32, i32) {
    %c0_i32 = arith.constant 0 : i32
    %c0_i32_0 = arith.constant 0 : i32
    return %c0_i32, %arg1 : i32, i32
  }
  func.func @transform_2(%arg0: i32, %arg1: i32) -> (i32, i32) {
    %c0_i32 = arith.constant 0 : i32
    %c0_i32_0 = arith.constant 0 : i32
    return %c0_i32, %arg1 : i32, i32
  }
  func.func @transform_3(%arg0: i32, %arg1: i32) -> (i32, i32) {
    %c0_i32 = arith.constant 0 : i32
    return %arg0, %arg1 : i32, i32
  }
}

</mosaic_0001>

<llo_original>
// kernel: tpu_custom_call.1
$region0: #{tpu_custom_call.1}
  #allocation0 [shape = 'u32[]', space=smem, size = 0x4, offset = 0x4, fixed_abs, tag = 'smem constant byte address 0x4 - core index']
  #allocation1 [shape = 'u32[72,128]{1,0:T(1,128)}', space=vmem, size = 0x9000, scoped, tag = 'internal scratch']
  %s0 = inlined_call_operand.vmem [shape: bf16[1024,27], index: 0, kind: input, shape index: {}]
  %s1 = inlined_call_operand.vmem [shape: bf16[27,32], index: 1, kind: input, shape index: {}]
  %s2 = inlined_call_operand.vmem [shape: f32[1,32], index: 2, kind: input, shape index: {}]
  %s3 = inlined_call_operand.vmem [shape: bf16[1024,32], index: 3, kind: output, shape index: {}]
  %s4 = sld [smem:[#allocation0]]
  $region22: #{tpu_custom_call.1} parent=0
    _
  %s6 = ssub.s32 1, %s4
  %s7 = scalar_select 0, %s6, %s4
  // Predicated region
  $region2: #{tpu_custom_call.1} parent=0 // pred_check
    _
  $region3: #{tpu_custom_call.1} parent=0 // pred_check_branch
    %9 = sbr.rel (0) target = $region5
  $region4: #{tpu_custom_call.1} parent=0 // pred_region
    _
  $region5: #{tpu_custom_call.1} parent=0 // pred_fallthru
    _
  // Predicated region
  $region6: #{tpu_custom_call.1} parent=0 // pred_check
    _
  $region7: #{tpu_custom_call.1} parent=0 // pred_check_branch
    %11 = sbr.rel (0) target = $region9
  $region8: #{tpu_custom_call.1} parent=0 // pred_region
    _
  $region9: #{tpu_custom_call.1} parent=0 // pred_fallthru
    _
  // Predicated region
  $region10: #{tpu_custom_call.1} parent=0 // pred_check
    _
  $region11: #{tpu_custom_call.1} parent=0 // pred_check_branch
    %13 = sbr.rel (0) target = $region13
  $region12: #{tpu_custom_call.1} parent=0 // pred_region
    _
  $region13: #{tpu_custom_call.1} parent=0 // pred_fallthru
    _
  %v15 = vld [vmem:[%s0] sm:$0xf]
  %v16 = vld [vmem:[%s0 + $0x4] sm:$0xf]
  %v17 = vld [vmem:[%s0 + $0x8] sm:$0xf]
  %v18 = vld [vmem:[%s0 + $0xc] sm:$0xf]
  %v19 = vld [vmem:[%s0 + $0x10] sm:$0xf]
  %v20 = vld [vmem:[%s0 + $0x14] sm:$0xf]
  %v21 = vld [vmem:[%s0 + $0x18] sm:$0xf]
  %v22 = vld [vmem:[%s0 + $0x1c] sm:$0xf]
  %v23 = vld [vmem:[%s0 + $0x20] sm:$0xf]
  %v24 = vld [vmem:[%s0 + $0x24] sm:$0xf]
  %v25 = vld [vmem:[%s0 + $0x28] sm:$0xf]
  %v26 = vld [vmem:[%s0 + $0x2c] sm:$0xf]
  %v27 = vld [vmem:[%s0 + $0x30] sm:$0xf]
  %v28 = vld [vmem:[%s0 + $0x34] sm:$0xf]
  %v29 = vld [vmem:[%s0 + $0x38] sm:$0xf]
  %v30 = vld [vmem:[%s0 + $0x3c] sm:$0xf]
  %v31 = vld [vmem:[%s0 + $0x40] sm:$0xf]
  %v32 = vld [vmem:[%s0 + $0x44] sm:$0xf]
  %v33 = vld [vmem:[%s0 + $0x48] sm:$0xf]
  %v34 = vld [vmem:[%s0 + $0x4c] sm:$0xf]
  %v35 = vld [vmem:[%s0 + $0x50] sm:$0xf]
  %v36 = vld [vmem:[%s0 + $0x54] sm:$0xf]
  %v37 = vld [vmem:[%s0 + $0x58] sm:$0xf]
  %v38 = vld [vmem:[%s0 + $0x5c] sm:$0xf]
  %v39 = vld [vmem:[%s0 + $0x60] sm:$0xf]
  %v40 = vld [vmem:[%s0 + $0x64] sm:$0xf]
  %v41 = vld [vmem:[%s0 + $0x68] sm:$0xf]
  %v42 = vld [vmem:[%s0 + $0x6c] sm:$0xf]
  %v43 = vld [vmem:[%s0 + $0x70] sm:$0xf]
  %v44 = vld [vmem:[%s0 + $0x74] sm:$0xf]
  %v45 = vld [vmem:[%s0 + $0x78] sm:$0xf]
  %v46 = vld [vmem:[%s0 + $0x7c] sm:$0xf]
  %v47 = vld [vmem:[%s0 + $0x80] sm:$0xf]
  %v48 = vld [vmem:[%s0 + $0x84] sm:$0xf]
  %v49 = vld [vmem:[%s0 + $0x88] sm:$0xf]
  %v50 = vld [vmem:[%s0 + $0x8c] sm:$0xf]
  %v51 = vld [vmem:[%s0 + $0x90] sm:$0xf]
  %v52 = vld [vmem:[%s0 + $0x94] sm:$0xf]
  %v53 = vld [vmem:[%s0 + $0x98] sm:$0xf]
  %v54 = vld [vmem:[%s0 + $0x9c] sm:$0xf]
  %v55 = vld [vmem:[%s0 + $0xa0] sm:$0xf]
  %v56 = vld [vmem:[%s0 + $0xa4] sm:$0xf]
  %v57 = vld [vmem:[%s0 + $0xa8] sm:$0xf]
  %v58 = vld [vmem:[%s0 + $0xac] sm:$0xf]
  %v59 = vld [vmem:[%s0 + $0xb0] sm:$0xf]
  %v60 = vld [vmem:[%s0 + $0xb4] sm:$0xf]
  %v61 = vld [vmem:[%s0 + $0xb8] sm:$0xf]
  %v62 = vld [vmem:[%s0 + $0xbc] sm:$0xf]
  %v63 = vld [vmem:[%s0 + $0xc0] sm:$0xf]
  %v64 = vld [vmem:[%s0 + $0xc4] sm:$0xf]
  %v65 = vld [vmem:[%s0 + $0xc8] sm:$0xf]
  %v66 = vld [vmem:[%s0 + $0xcc] sm:$0xf]
  %v67 = vld [vmem:[%s0 + $0xd0] sm:$0xf]
  %v68 = vld [vmem:[%s0 + $0xd4] sm:$0xf]
  %v69 = vld [vmem:[%s0 + $0xd8] sm:$0xf]
  %v70 = vld [vmem:[%s0 + $0xdc] sm:$0xf]
  %v71 = vld [vmem:[%s0 + $0xe0] sm:$0xf]
  %v72 = vld [vmem:[%s0 + $0xe4] sm:$0xf]
  %v73 = vld [vmem:[%s0 + $0xe8] sm:$0xf]
  %v74 = vld [vmem:[%s0 + $0xec] sm:$0xf]
  %v75 = vld [vmem:[%s0 + $0xf0] sm:$0xf]
  %v76 = vld [vmem:[%s0 + $0xf4] sm:$0xf]
  %v77 = vld [vmem:[%s0 + $0xf8] sm:$0xf]
  %v78 = vld [vmem:[%s0 + $0xfc] sm:$0xf]
  %v79 = vld [vmem:[%s0 + $0x100] sm:$0xf]
  %v80 = vld [vmem:[%s0 + $0x104] sm:$0xf]
  %v81 = vld [vmem:[%s0 + $0x108] sm:$0xf]
  %v82 = vld [vmem:[%s0 + $0x10c] sm:$0xf]
  %v83 = vld [vmem:[%s0 + $0x110] sm:$0xf]
  %v84 = vld [vmem:[%s0 + $0x114] sm:$0xf]
  %v85 = vld [vmem:[%s0 + $0x118] sm:$0xf]
  %v86 = vld [vmem:[%s0 + $0x11c] sm:$0xf]
  %v87 = vld [vmem:[%s0 + $0x120] sm:$0xf]
  %v88 = vld [vmem:[%s0 + $0x124] sm:$0xf]
  %v89 = vld [vmem:[%s0 + $0x128] sm:$0xf]
  %v90 = vld [vmem:[%s0 + $0x12c] sm:$0xf]
  %v91 = vld [vmem:[%s0 + $0x130] sm:$0xf]
  %v92 = vld [vmem:[%s0 + $0x134] sm:$0xf]
  %v93 = vld [vmem:[%s0 + $0x138] sm:$0xf]
  %v94 = vld [vmem:[%s0 + $0x13c] sm:$0xf]
  %v95 = vld [vmem:[%s0 + $0x140] sm:$0xf]
  %v96 = vld [vmem:[%s0 + $0x144] sm:$0xf]
  %v97 = vld [vmem:[%s0 + $0x148] sm:$0xf]
  %v98 = vld [vmem:[%s0 + $0x14c] sm:$0xf]
  %v99 = vld [vmem:[%s0 + $0x150] sm:$0xf]
  %v100 = vld [vmem:[%s0 + $0x154] sm:$0xf]
  %v101 = vld [vmem:[%s0 + $0x158] sm:$0xf]
  %v102 = vld [vmem:[%s0 + $0x15c] sm:$0xf]
  %v103 = vld [vmem:[%s0 + $0x160] sm:$0xf]
  %v104 = vld [vmem:[%s0 + $0x164] sm:$0xf]
  %v105 = vld [vmem:[%s0 + $0x168] sm:$0xf]
  %v106 = vld [vmem:[%s0 + $0x16c] sm:$0xf]
  %v107 = vld [vmem:[%s0 + $0x170] sm:$0xf]
  %v108 = vld [vmem:[%s0 + $0x174] sm:$0xf]
  %v109 = vld [vmem:[%s0 + $0x178] sm:$0xf]
  %v110 = vld [vmem:[%s0 + $0x17c] sm:$0xf]
  %v111 = vld [vmem:[%s0 + $0x180] sm:$0xf]
  %v112 = vld [vmem:[%s0 + $0x184] sm:$0xf]
  %v113 = vld [vmem:[%s0 + $0x188] sm:$0xf]
  %v114 = vld [vmem:[%s0 + $0x18c] sm:$0xf]
  %v115 = vld [vmem:[%s0 + $0x190] sm:$0xf]
  %v116 = vld [vmem:[%s0 + $0x194] sm:$0xf]
  %v117 = vld [vmem:[%s0 + $0x198] sm:$0xf]
  %v118 = vld [vmem:[%s0 + $0x19c] sm:$0xf]
  %v119 = vld [vmem:[%s0 + $0x1a0] sm:$0xf]
  %v120 = vld [vmem:[%s0 + $0x1a4] sm:$0xf]
  %v121 = vld [vmem:[%s0 + $0x1a8] sm:$0xf]
  %v122 = vld [vmem:[%s0 + $0x1ac] sm:$0xf]
  %v123 = vld [vmem:[%s0 + $0x1b0] sm:$0xf]
  %v124 = vld [vmem:[%s0 + $0x1b4] sm:$0xf]
  %v125 = vld [vmem:[%s0 + $0x1b8] sm:$0xf]
  %v126 = vld [vmem:[%s0 + $0x1bc] sm:$0xf]
  %v127 = vld [vmem:[%s0 + $0x1c0] sm:$0xf]
  %v128 = vld [vmem:[%s0 + $0x1c4] sm:$0xf]
  %v129 = vld [vmem:[%s0 + $0x1c8] sm:$0xf]
  %v130 = vld [vmem:[%s0 + $0x1cc] sm:$0xf]
  %v131 = vld [vmem:[%s0 + $0x1d0] sm:$0xf]
  %v132 = vld [vmem:[%s0 + $0x1d4] sm:$0xf]
  %v133 = vld [vmem:[%s0 + $0x1d8] sm:$0xf]
  %v134 = vld [vmem:[%s0 + $0x1dc] sm:$0xf]
  %v135 = vld [vmem:[%s0 + $0x1e0] sm:$0xf]
  %v136 = vld [vmem:[%s0 + $0x1e4] sm:$0xf]
  %v137 = vld [vmem:[%s0 + $0x1e8] sm:$0xf]
  %v138 = vld [vmem:[%s0 + $0x1ec] sm:$0xf]
  %v139 = vld [vmem:[%s0 + $0x1f0] sm:$0xf]
  %v140 = vld [vmem:[%s0 + $0x1f4] sm:$0xf]
  %v141 = vld [vmem:[%s0 + $0x1f8] sm:$0xf]
  %v142 = vld [vmem:[%s0 + $0x1fc] sm:$0xf]
  %v143 = vld [vmem:[%s1] sm:$0xf]
  %v144 = vld [vmem:[%s1 + $0x4] sm:$0xf]
  %v145 = vld [vmem:[%s1 + $0x8] sm:$0xf]
  %v146 = vld [vmem:[%s1 + $0xc] sm:$0x3]
  %v147 = vld [vmem:[%s2] sm:$0x1]
  %v149 = vperm.slane %v147, 0
  %v279 = vunpack.c.l.b16 %v15
  %v280 = vunpack.c.l.b16 %v16
  %v281 = vunpack.c.l.b16 %v17
  %v282 = vunpack.c.l.b16 %v18
  %v283 = vunpack.c.l.b16 %v19
  %v284 = vunpack.c.l.b16 %v20
  %v285 = vunpack.c.l.b16 %v21
  %v286 = vunpack.c.l.b16 %v22
  %v287 = vunpack.c.l.b16 %v23
  %v288 = vunpack.c.l.b16 %v24
  %v289 = vunpack.c.l.b16 %v25
  %v290 = vunpack.c.l.b16 %v26
  %v291 = vunpack.c.l.b16 %v27
  %v292 = vunpack.c.l.b16 %v28
  %v293 = vunpack.c.l.b16 %v29
  %v294 = vunpack.c.l.b16 %v30
  %v295 = vunpack.c.l.b16 %v31
  %v296 = vunpack.c.l.b16 %v32
  %v297 = vunpack.c.l.b16 %v33
  %v298 = vunpack.c.l.b16 %v34
  %v299 = vunpack.c.l.b16 %v35
  %v300 = vunpack.c.l.b16 %v36
  %v301 = vunpack.c.l.b16 %v37
  %v302 = vunpack.c.l.b16 %v38
  %v303 = vunpack.c.l.b16 %v39
  %v304 = vunpack.c.l.b16 %v40
  %v305 = vunpack.c.l.b16 %v41
  %v306 = vunpack.c.l.b16 %v42
  %v307 = vunpack.c.l.b16 %v43
  %v308 = vunpack.c.l.b16 %v44
  %v309 = vunpack.c.l.b16 %v45
  %v310 = vunpack.c.l.b16 %v46
  %v311 = vunpack.c.l.b16 %v47
  %v312 = vunpack.c.l.b16 %v48
  %v313 = vunpack.c.l.b16 %v49
  %v314 = vunpack.c.l.b16 %v50
  %v315 = vunpack.c.l.b16 %v51
  %v316 = vunpack.c.l.b16 %v52
  %v317 = vunpack.c.l.b16 %v53
  %v318 = vunpack.c.l.b16 %v54
  %v319 = vunpack.c.l.b16 %v55
  %v320 = vunpack.c.l.b16 %v56
  %v321 = vunpack.c.l.b16 %v57
  %v322 = vunpack.c.l.b16 %v58
  %v323 = vunpack.c.l.b16 %v59
  %v324 = vunpack.c.l.b16 %v60
  %v325 = vunpack.c.l.b16 %v61
  %v326 = vunpack.c.l.b16 %v62
  %v327 = vunpack.c.l.b16 %v63
  %v328 = vunpack.c.l.b16 %v64
  %v329 = vunpack.c.l.b16 %v65
  %v330 = vunpack.c.l.b16 %v66
  %v331 = vunpack.c.l.b16 %v67
  %v332 = vunpack.c.l.b16 %v68
  %v333 = vunpack.c.l.b16 %v69
  %v334 = vunpack.c.l.b16 %v70
  %v335 = vunpack.c.l.b16 %v71
  %v336 = vunpack.c.l.b16 %v72
  %v337 = vunpack.c.l.b16 %v73
  %v338 = vunpack.c.l.b16 %v74
  %v339 = vunpack.c.l.b16 %v75
  %v340 = vunpack.c.l.b16 %v76
  %v341 = vunpack.c.l.b16 %v77
  %v342 = vunpack.c.l.b16 %v78
  %v343 = vunpack.c.l.b16 %v79
  %v344 = vunpack.c.l.b16 %v80
  %v345 = vunpack.c.l.b16 %v81
  %v346 = vunpack.c.l.b16 %v82
  %v347 = vunpack.c.l.b16 %v83
  %v348 = vunpack.c.l.b16 %v84
  %v349 = vunpack.c.l.b16 %v85
  %v350 = vunpack.c.l.b16 %v86
  %v351 = vunpack.c.l.b16 %v87
  %v352 = vunpack.c.l.b16 %v88
  %v353 = vunpack.c.l.b16 %v89
  %v354 = vunpack.c.l.b16 %v90
  %v355 = vunpack.c.l.b16 %v91
  %v356 = vunpack.c.l.b16 %v92
  %v357 = vunpack.c.l.b16 %v93
  %v358 = vunpack.c.l.b16 %v94
  %v359 = vunpack.c.l.b16 %v95
  %v360 = vunpack.c.l.b16 %v96
  %v361 = vunpack.c.l.b16 %v97
  %v362 = vunpack.c.l.b16 %v98
  %v363 = vunpack.c.l.b16 %v99
  %v364 = vunpack.c.l.b16 %v100
  %v365 = vunpack.c.l.b16 %v101
  %v366 = vunpack.c.l.b16 %v102
  %v367 = vunpack.c.l.b16 %v103
  %v368 = vunpack.c.l.b16 %v104
  %v369 = vunpack.c.l.b16 %v105
  %v370 = vunpack.c.l.b16 %v106
  %v371 = vunpack.c.l.b16 %v107
  %v372 = vunpack.c.l.b16 %v108
  %v373 = vunpack.c.l.b16 %v109
  %v374 = vunpack.c.l.b16 %v110
  %v375 = vunpack.c.l.b16 %v111
  %v376 = vunpack.c.l.b16 %v112
  %v377 = vunpack.c.l.b16 %v113
  %v378 = vunpack.c.l.b16 %v114
  %v379 = vunpack.c.l.b16 %v115
  %v380 = vunpack.c.l.b16 %v116
  %v381 = vunpack.c.l.b16 %v117
  %v382 = vunpack.c.l.b16 %v118
  %v383 = vunpack.c.l.b16 %v119
  %v384 = vunpack.c.l.b16 %v120
  %v385 = vunpack.c.l.b16 %v121
  %v386 = vunpack.c.l.b16 %v122
  %v387 = vunpack.c.l.b16 %v123
  %v388 = vunpack.c.l.b16 %v124
  %v389 = vunpack.c.l.b16 %v125
  %v390 = vunpack.c.l.b16 %v126
  %v391 = vunpack.c.l.b16 %v127
  %v392 = vunpack.c.l.b16 %v128
  %v393 = vunpack.c.l.b16 %v129
  %v394 = vunpack.c.l.b16 %v130
  %v395 = vunpack.c.l.b16 %v131
  %v396 = vunpack.c.l.b16 %v132
  %v397 = vunpack.c.l.b16 %v133
  %v398 = vunpack.c.l.b16 %v134
  %v399 = vunpack.c.l.b16 %v135
  %v400 = vunpack.c.l.b16 %v136
  %v401 = vunpack.c.l.b16 %v137
  %v402 = vunpack.c.l.b16 %v138
  %v403 = vunpack.c.l.b16 %v139
  %v404 = vunpack.c.l.b16 %v140
  %v405 = vunpack.c.l.b16 %v141
  %v406 = vunpack.c.l.b16 %v142
  %v407 = vpack.c.b16 %v280, %v279
  %v408 = vpack.c.b16 %v282, %v281
  %v409 = vpack.c.b16 %v284, %v283
  %v410 = vpack.c.b16 %v286, %v285
  %v411 = vpack.c.b16 %v288, %v287
  %v412 = vpack.c.b16 %v290, %v289
  %v413 = vpack.c.b16 %v292, %v291
  %v414 = vpack.c.b16 %v294, %v293
  %v415 = vpack.c.b16 %v296, %v295
  %v416 = vpack.c.b16 %v298, %v297
  %v417 = vpack.c.b16 %v300, %v299
  %v418 = vpack.c.b16 %v302, %v301
  %v419 = vpack.c.b16 %v304, %v303
  %v420 = vpack.c.b16 %v306, %v305
  %v421 = vpack.c.b16 %v308, %v307
  %v422 = vpack.c.b16 %v310, %v309
  %v423 = vpack.c.b16 %v312, %v311
  %v424 = vpack.c.b16 %v314, %v313
  %v425 = vpack.c.b16 %v316, %v315
  %v426 = vpack.c.b16 %v318, %v317
  %v427 = vpack.c.b16 %v320, %v319
  %v428 = vpack.c.b16 %v322, %v321
  %v429 = vpack.c.b16 %v324, %v323
  %v430 = vpack.c.b16 %v326, %v325
  %v431 = vpack.c.b16 %v328, %v327
  %v432 = vpack.c.b16 %v330, %v329
  %v433 = vpack.c.b16 %v332, %v331
  %v434 = vpack.c.b16 %v334, %v333
  %v435 = vpack.c.b16 %v336, %v335
  %v436 = vpack.c.b16 %v338, %v337
  %v437 = vpack.c.b16 %v340, %v339
  %v438 = vpack.c.b16 %v342, %v341
  %v439 = vpack.c.b16 %v344, %v343
  %v440 = vpack.c.b16 %v346, %v345
  %v441 = vpack.c.b16 %v348, %v347
  %v442 = vpack.c.b16 %v350, %v349
  %v443 = vpack.c.b16 %v352, %v351
  %v444 = vpack.c.b16 %v354, %v353
  %v445 = vpack.c.b16 %v356, %v355
  %v446 = vpack.c.b16 %v358, %v357
  %v447 = vpack.c.b16 %v360, %v359
  %v448 = vpack.c.b16 %v362, %v361
  %v449 = vpack.c.b16 %v364, %v363
  %v450 = vpack.c.b16 %v366, %v365
  %v451 = vpack.c.b16 %v368, %v367
  %v452 = vpack.c.b16 %v370, %v369
  %v453 = vpack.c.b16 %v372, %v371
  %v454 = vpack.c.b16 %v374, %v373
  %v455 = vpack.c.b16 %v376, %v375
  %v456 = vpack.c.b16 %v378, %v377
  %v457 = vpack.c.b16 %v380, %v379
  %v458 = vpack.c.b16 %v382, %v381
  %v459 = vpack.c.b16 %v384, %v383
  %v460 = vpack.c.b16 %v386, %v385
  %v461 = vpack.c.b16 %v388, %v387
  %v462 = vpack.c.b16 %v390, %v389
  %v463 = vpack.c.b16 %v392, %v391
  %v464 = vpack.c.b16 %v394, %v393
  %v465 = vpack.c.b16 %v396, %v395
  %v466 = vpack.c.b16 %v398, %v397
  %v467 = vpack.c.b16 %v400, %v399
  %v468 = vpack.c.b16 %v402, %v401
  %v469 = vpack.c.b16 %v404, %v403
  %v470 = vpack.c.b16 %v406, %v405
  %v475 = vunpack.c.l.b16 %v143
  %v476 = vunpack.c.l.b16 %v144
  %v477 = vunpack.c.l.b16 %v145
  %v478 = vunpack.c.l.b16 %v146
  %v479 = vpack.c.b16 %v476, %v475
  %v480 = vpack.c.b16 %v478, %v477
  %vm482 = vcmask 220160
  %v484 = vsel %vm482, %v407, 0
  %v487 = vsel %vm482, %v408, 0
  %v490 = vsel %vm482, %v409, 0
  %v493 = vsel %vm482, %v410, 0
  %v496 = vsel %vm482, %v411, 0
  %v499 = vsel %vm482, %v412, 0
  %v502 = vsel %vm482, %v413, 0
  %v505 = vsel %vm482, %v414, 0
  %v508 = vsel %vm482, %v415, 0
  %v511 = vsel %vm482, %v416, 0
  %v514 = vsel %vm482, %v417, 0
  %v517 = vsel %vm482, %v418, 0
  %v520 = vsel %vm482, %v419, 0
  %v523 = vsel %vm482, %v420, 0
  %v526 = vsel %vm482, %v421, 0
  %v529 = vsel %vm482, %v422, 0
  %v532 = vsel %vm482, %v423, 0
  %v535 = vsel %vm482, %v424, 0
  %v538 = vsel %vm482, %v425, 0
  %v541 = vsel %vm482, %v426, 0
  %v544 = vsel %vm482, %v427, 0
  %v547 = vsel %vm482, %v428, 0
  %v550 = vsel %vm482, %v429, 0
  %v553 = vsel %vm482, %v430, 0
  %v556 = vsel %vm482, %v431, 0
  %v559 = vsel %vm482, %v432, 0
  %v562 = vsel %vm482, %v433, 0
  %v565 = vsel %vm482, %v434, 0
  %v568 = vsel %vm482, %v435, 0
  %v571 = vsel %vm482, %v436, 0
  %v574 = vsel %vm482, %v437, 0
  %v577 = vsel %vm482, %v438, 0
  %v580 = vsel %vm482, %v439, 0
  %v583 = vsel %vm482, %v440, 0
  %v586 = vsel %vm482, %v441, 0
  %v589 = vsel %vm482, %v442, 0
  %v592 = vsel %vm482, %v443, 0
  %v595 = vsel %vm482, %v444, 0
  %v598 = vsel %vm482, %v445, 0
  %v601 = vsel %vm482, %v446, 0
  %v604 = vsel %vm482, %v447, 0
  %v607 = vsel %vm482, %v448, 0
  %v610 = vsel %vm482, %v449, 0
  %v613 = vsel %vm482, %v450, 0
  %v616 = vsel %vm482, %v451, 0
  %v619 = vsel %vm482, %v452, 0
  %v622 = vsel %vm482, %v453, 0
  %v625 = vsel %vm482, %v454, 0
  %v628 = vsel %vm482, %v455, 0
  %v631 = vsel %vm482, %v456, 0
  %v634 = vsel %vm482, %v457, 0
  %v637 = vsel %vm482, %v458, 0
  %v640 = vsel %vm482, %v459, 0
  %v643 = vsel %vm482, %v460, 0
  %v646 = vsel %vm482, %v461, 0
  %v649 = vsel %vm482, %v462, 0
  %v652 = vsel %vm482, %v463, 0
  %v655 = vsel %vm482, %v464, 0
  %v658 = vsel %vm482, %v465, 0
  %v661 = vsel %vm482, %v466, 0
  %v664 = vsel %vm482, %v467, 0
  %v667 = vsel %vm482, %v468, 0
  %v670 = vsel %vm482, %v469, 0
  %v673 = vsel %vm482, %v470, 0
  %vm675 = vcmask 1044480
  %vm676 = vcmask 1045504
  %v677 = vsel %vm675, 4294967295, 65535
  %v678 = vsel %vm676, %v677, 0
  %v680 = vand.u32 %v480, %v678
  %682 = vmatpush.bf16.msra.mxu0 0
  %683 = vmatpush.bf16.msra.mxu0 0
  %684 = vmatpush.bf16.msra.mxu0 0
  %685 = vmatpush.bf16.msra.mxu0 0
  %686 = vmatpush.bf16.msra.mxu0 0
  %687 = vmatpush.bf16.msra.mxu0 0
  %688 = vmatpush.bf16.msra.mxu0 %v680
  %689 = vmatpush.bf16.msra.mxu0 %v479
  %690 = vmatmul.bf16.gmra.mxu0 %v484
  %v691 = vpop.f32.mrf.mxu0
  %v692 = vadd.f32 %v149, %v691
  %v693 = vpop.f32.mrf.mxu0
  %v694 = vadd.f32 %v149, %v693
  %695 = vmatmul.bf16.gmra.mxu0 %v487
  %v696 = vpop.f32.mrf.mxu0
  %v697 = vadd.f32 %v149, %v696
  %v698 = vpop.f32.mrf.mxu0
  %v699 = vadd.f32 %v149, %v698
  %700 = vmatmul.bf16.gmra.mxu0 %v490
  %v701 = vpop.f32.mrf.mxu0
  %v702 = vadd.f32 %v149, %v701
  %v703 = vpop.f32.mrf.mxu0
  %v704 = vadd.f32 %v149, %v703
  %705 = vmatmul.bf16.gmra.mxu0 %v493
  %v706 = vpop.f32.mrf.mxu0
  %v707 = vadd.f32 %v149, %v706
  %v708 = vpop.f32.mrf.mxu0
  %v709 = vadd.f32 %v149, %v708
  %710 = vmatmul.bf16.gmra.mxu0 %v496
  %v711 = vpop.f32.mrf.mxu0
  %v712 = vadd.f32 %v149, %v711
  %v713 = vpop.f32.mrf.mxu0
  %v714 = vadd.f32 %v149, %v713
  %715 = vmatmul.bf16.gmra.mxu0 %v499
  %v716 = vpop.f32.mrf.mxu0
  %v717 = vadd.f32 %v149, %v716
  %v718 = vpop.f32.mrf.mxu0
  %v719 = vadd.f32 %v149, %v718
  %720 = vmatmul.bf16.gmra.mxu0 %v502
  %v721 = vpop.f32.mrf.mxu0
  %v722 = vadd.f32 %v149, %v721
  %v723 = vpop.f32.mrf.mxu0
  %v724 = vadd.f32 %v149, %v723
  %725 = vmatmul.bf16.gmra.mxu0 %v505
  %v726 = vpop.f32.mrf.mxu0
  %v727 = vadd.f32 %v149, %v726
  %v728 = vpop.f32.mrf.mxu0
  %v729 = vadd.f32 %v149, %v728
  %730 = vmatmul.bf16.gmra.mxu0 %v508
  %v731 = vpop.f32.mrf.mxu0
  %v732 = vadd.f32 %v149, %v731
  %v733 = vpop.f32.mrf.mxu0
  %v734 = vadd.f32 %v149, %v733
  %735 = vmatmul.bf16.gmra.mxu0 %v511
  %v736 = vpop.f32.mrf.mxu0
  %v737 = vadd.f32 %v149, %v736
  %v738 = vpop.f32.mrf.mxu0
  %v739 = vadd.f32 %v149, %v738
  %740 = vmatmul.bf16.gmra.mxu0 %v514
  %v741 = vpop.f32.mrf.mxu0
  %v742 = vadd.f32 %v149, %v741
  %v743 = vpop.f32.mrf.mxu0
  %v744 = vadd.f32 %v149, %v743
  %745 = vmatmul.bf16.gmra.mxu0 %v517
  %v746 = vpop.f32.mrf.mxu0
  %v747 = vadd.f32 %v149, %v746
  %v748 = vpop.f32.mrf.mxu0
  %v749 = vadd.f32 %v149, %v748
  %750 = vmatmul.bf16.gmra.mxu0 %v520
  %v751 = vpop.f32.mrf.mxu0
  %v752 = vadd.f32 %v149, %v751
  %v753 = vpop.f32.mrf.mxu0
  %v754 = vadd.f32 %v149, %v753
  %755 = vmatmul.bf16.gmra.mxu0 %v523
  %v756 = vpop.f32.mrf.mxu0
  %v757 = vadd.f32 %v149, %v756
  %v758 = vpop.f32.mrf.mxu0
  %v759 = vadd.f32 %v149, %v758
  %760 = vmatmul.bf16.gmra.mxu0 %v526
  %v761 = vpop.f32.mrf.mxu0
  %v762 = vadd.f32 %v149, %v761
  %v763 = vpop.f32.mrf.mxu0
  %v764 = vadd.f32 %v149, %v763
  %765 = vmatmul.bf16.gmra.mxu0 %v529
  %v766 = vpop.f32.mrf.mxu0
  %v767 = vadd.f32 %v149, %v766
  %v768 = vpop.f32.mrf.mxu0
  %v769 = vadd.f32 %v149, %v768
  %770 = vmatmul.bf16.gmra.mxu0 %v532
  %v771 = vpop.f32.mrf.mxu0
  %v772 = vadd.f32 %v149, %v771
  %v773 = vpop.f32.mrf.mxu0
  %v774 = vadd.f32 %v149, %v773
  %775 = vmatmul.bf16.gmra.mxu0 %v535
  %v776 = vpop.f32.mrf.mxu0
  %v777 = vadd.f32 %v149, %v776
  %v778 = vpop.f32.mrf.mxu0
  %v779 = vadd.f32 %v149, %v778
  %780 = vmatmul.bf16.gmra.mxu0 %v538
  %v781 = vpop.f32.mrf.mxu0
  %v782 = vadd.f32 %v149, %v781
  %v783 = vpop.f32.mrf.mxu0
  %v784 = vadd.f32 %v149, %v783
  %785 = vmatmul.bf16.gmra.mxu0 %v541
  %v786 = vpop.f32.mrf.mxu0
  %v787 = vadd.f32 %v149, %v786
  %v788 = vpop.f32.mrf.mxu0
  %v789 = vadd.f32 %v149, %v788
  %790 = vmatmul.bf16.gmra.mxu0 %v544
  %v791 = vpop.f32.mrf.mxu0
  %v792 = vadd.f32 %v149, %v791
  %v793 = vpop.f32.mrf.mxu0
  %v794 = vadd.f32 %v149, %v793
  %795 = vmatmul.bf16.gmra.mxu0 %v547
  %v796 = vpop.f32.mrf.mxu0
  %v797 = vadd.f32 %v149, %v796
  %v798 = vpop.f32.mrf.mxu0
  %v799 = vadd.f32 %v149, %v798
  %800 = vmatmul.bf16.gmra.mxu0 %v550
  %v801 = vpop.f32.mrf.mxu0
  %v802 = vadd.f32 %v149, %v801
  %v803 = vpop.f32.mrf.mxu0
  %v804 = vadd.f32 %v149, %v803
  %805 = vmatmul.bf16.gmra.mxu0 %v553
  %v806 = vpop.f32.mrf.mxu0
  %v807 = vadd.f32 %v149, %v806
  %v808 = vpop.f32.mrf.mxu0
  %v809 = vadd.f32 %v149, %v808
  %810 = vmatmul.bf16.gmra.mxu0 %v556
  %v811 = vpop.f32.mrf.mxu0
  %v812 = vadd.f32 %v149, %v811
  %v813 = vpop.f32.mrf.mxu0
  %v814 = vadd.f32 %v149, %v813
  %815 = vmatmul.bf16.gmra.mxu0 %v559
  %v816 = vpop.f32.mrf.mxu0
  %v817 = vadd.f32 %v149, %v816
  %v818 = vpop.f32.mrf.mxu0
  %v819 = vadd.f32 %v149, %v818
  %820 = vmatmul.bf16.gmra.mxu0 %v562
  %v821 = vpop.f32.mrf.mxu0
  %v822 = vadd.f32 %v149, %v821
  %v823 = vpop.f32.mrf.mxu0
  %v824 = vadd.f32 %v149, %v823
  %825 = vmatmul.bf16.gmra.mxu0 %v565
  %v826 = vpop.f32.mrf.mxu0
  %v827 = vadd.f32 %v149, %v826
  %v828 = vpop.f32.mrf.mxu0
  %v829 = vadd.f32 %v149, %v828
  %830 = vmatmul.bf16.gmra.mxu0 %v568
  %v831 = vpop.f32.mrf.mxu0
  %v832 = vadd.f32 %v149, %v831
  %v833 = vpop.f32.mrf.mxu0
  %v834 = vadd.f32 %v149, %v833
  %835 = vmatmul.bf16.gmra.mxu0 %v571
  %v836 = vpop.f32.mrf.mxu0
  %v837 = vadd.f32 %v149, %v836
  %v838 = vpop.f32.mrf.mxu0
  %v839 = vadd.f32 %v149, %v838
  %840 = vmatmul.bf16.gmra.mxu0 %v574
  %v841 = vpop.f32.mrf.mxu0
  %v842 = vadd.f32 %v149, %v841
  %v843 = vpop.f32.mrf.mxu0
  %v844 = vadd.f32 %v149, %v843
  %845 = vmatmul.bf16.gmra.mxu0 %v577
  %v846 = vpop.f32.mrf.mxu0
  %v847 = vadd.f32 %v149, %v846
  %v848 = vpop.f32.mrf.mxu0
  %v849 = vadd.f32 %v149, %v848
  %850 = vmatmul.bf16.gmra.mxu0 %v580
  %v851 = vpop.f32.mrf.mxu0
  %v852 = vadd.f32 %v149, %v851
  %v853 = vpop.f32.mrf.mxu0
  %v854 = vadd.f32 %v149, %v853
  %855 = vmatmul.bf16.gmra.mxu0 %v583
  %v856 = vpop.f32.mrf.mxu0
  %v857 = vadd.f32 %v149, %v856
  %v858 = vpop.f32.mrf.mxu0
  %v859 = vadd.f32 %v149, %v858
  %860 = vmatmul.bf16.gmra.mxu0 %v586
  %v861 = vpop.f32.mrf.mxu0
  %v862 = vadd.f32 %v149, %v861
  %v863 = vpop.f32.mrf.mxu0
  %v864 = vadd.f32 %v149, %v863
  %865 = vmatmul.bf16.gmra.mxu0 %v589
  %v866 = vpop.f32.mrf.mxu0
  %v867 = vadd.f32 %v149, %v866
  %v868 = vpop.f32.mrf.mxu0
  %v869 = vadd.f32 %v149, %v868
  %870 = vmatmul.bf16.gmra.mxu0 %v592
  %v871 = vpop.f32.mrf.mxu0
  %v872 = vadd.f32 %v149, %v871
  %v873 = vpop.f32.mrf.mxu0
  %v874 = vadd.f32 %v149, %v873
  %875 = vmatmul.bf16.gmra.mxu0 %v595
  %v876 = vpop.f32.mrf.mxu0
  %v877 = vadd.f32 %v149, %v876
  %v878 = vpop.f32.mrf.mxu0
  %v879 = vadd.f32 %v149, %v878
  %880 = vmatmul.bf16.gmra.mxu0 %v598
  %v881 = vpop.f32.mrf.mxu0
  %v882 = vadd.f32 %v149, %v881
  %v883 = vpop.f32.mrf.mxu0
  %v884 = vadd.f32 %v149, %v883
  %885 = vmatmul.bf16.gmra.mxu0 %v601
  %v886 = vpop.f32.mrf.mxu0
  %v887 = vadd.f32 %v149, %v886
  %v888 = vpop.f32.mrf.mxu0
  %v889 = vadd.f32 %v149, %v888
  %890 = vmatmul.bf16.gmra.mxu0 %v604
  %v891 = vpop.f32.mrf.mxu0
  %v892 = vadd.f32 %v149, %v891
  %v893 = vpop.f32.mrf.mxu0
  %v894 = vadd.f32 %v149, %v893
  %895 = vmatmul.bf16.gmra.mxu0 %v607
  %v896 = vpop.f32.mrf.mxu0
  %v897 = vadd.f32 %v149, %v896
  %v898 = vpop.f32.mrf.mxu0
  %v899 = vadd.f32 %v149, %v898
  %900 = vmatmul.bf16.gmra.mxu0 %v610
  %v901 = vpop.f32.mrf.mxu0
  %v902 = vadd.f32 %v149, %v901
  %v903 = vpop.f32.mrf.mxu0
  %v904 = vadd.f32 %v149, %v903
  %905 = vmatmul.bf16.gmra.mxu0 %v613
  %v906 = vpop.f32.mrf.mxu0
  %v907 = vadd.f32 %v149, %v906
  %v908 = vpop.f32.mrf.mxu0
  %v909 = vadd.f32 %v149, %v908
  %910 = vmatmul.bf16.gmra.mxu0 %v616
  %v911 = vpop.f32.mrf.mxu0
  %v912 = vadd.f32 %v149, %v911
  %v913 = vpop.f32.mrf.mxu0
  %v914 = vadd.f32 %v149, %v913
  %915 = vmatmul.bf16.gmra.mxu0 %v619
  %v916 = vpop.f32.mrf.mxu0
  %v917 = vadd.f32 %v149, %v916
  %v918 = vpop.f32.mrf.mxu0
  %v919 = vadd.f32 %v149, %v918
  %920 = vmatmul.bf16.gmra.mxu0 %v622
  %v921 = vpop.f32.mrf.mxu0
  %v922 = vadd.f32 %v149, %v921
  %v923 = vpop.f32.mrf.mxu0
  %v924 = vadd.f32 %v149, %v923
  %925 = vmatmul.bf16.gmra.mxu0 %v625
  %v926 = vpop.f32.mrf.mxu0
  %v927 = vadd.f32 %v149, %v926
  %v928 = vpop.f32.mrf.mxu0
  %v929 = vadd.f32 %v149, %v928
  %930 = vmatmul.bf16.gmra.mxu0 %v628
  %v931 = vpop.f32.mrf.mxu0
  %v932 = vadd.f32 %v149, %v931
  %v933 = vpop.f32.mrf.mxu0
  %v934 = vadd.f32 %v149, %v933
  %935 = vmatmul.bf16.gmra.mxu0 %v631
  %v936 = vpop.f32.mrf.mxu0
  %v937 = vadd.f32 %v149, %v936
  %v938 = vpop.f32.mrf.mxu0
  %v939 = vadd.f32 %v149, %v938
  %940 = vmatmul.bf16.gmra.mxu0 %v634
  %v941 = vpop.f32.mrf.mxu0
  %v942 = vadd.f32 %v149, %v941
  %v943 = vpop.f32.mrf.mxu0
  %v944 = vadd.f32 %v149, %v943
  %945 = vmatmul.bf16.gmra.mxu0 %v637
  %v946 = vpop.f32.mrf.mxu0
  %v947 = vadd.f32 %v149, %v946
  %v948 = vpop.f32.mrf.mxu0
  %v949 = vadd.f32 %v149, %v948
  %950 = vmatmul.bf16.gmra.mxu0 %v640
  %v951 = vpop.f32.mrf.mxu0
  %v952 = vadd.f32 %v149, %v951
  %v953 = vpop.f32.mrf.mxu0
  %v954 = vadd.f32 %v149, %v953
  %955 = vmatmul.bf16.gmra.mxu0 %v643
  %v956 = vpop.f32.mrf.mxu0
  %v957 = vadd.f32 %v149, %v956
  %v958 = vpop.f32.mrf.mxu0
  %v959 = vadd.f32 %v149, %v958
  %960 = vmatmul.bf16.gmra.mxu0 %v646
  %v961 = vpop.f32.mrf.mxu0
  %v962 = vadd.f32 %v149, %v961
  %v963 = vpop.f32.mrf.mxu0
  %v964 = vadd.f32 %v149, %v963
  %965 = vmatmul.bf16.gmra.mxu0 %v649
  %v966 = vpop.f32.mrf.mxu0
  %v967 = vadd.f32 %v149, %v966
  %v968 = vpop.f32.mrf.mxu0
  %v969 = vadd.f32 %v149, %v968
  %970 = vmatmul.bf16.gmra.mxu0 %v652
  %v971 = vpop.f32.mrf.mxu0
  %v972 = vadd.f32 %v149, %v971
  %v973 = vpop.f32.mrf.mxu0
  %v974 = vadd.f32 %v149, %v973
  %975 = vmatmul.bf16.gmra.mxu0 %v655
  %v976 = vpop.f32.mrf.mxu0
  %v977 = vadd.f32 %v149, %v976
  %v978 = vpop.f32.mrf.mxu0
  %v979 = vadd.f32 %v149, %v978
  %980 = vmatmul.bf16.gmra.mxu0 %v658
  %v981 = vpop.f32.mrf.mxu0
  %v982 = vadd.f32 %v149, %v981
  %v983 = vpop.f32.mrf.mxu0
  %v984 = vadd.f32 %v149, %v983
  %985 = vmatmul.bf16.gmra.mxu0 %v661
  %v986 = vpop.f32.mrf.mxu0
  %v987 = vadd.f32 %v149, %v986
  %v988 = vpop.f32.mrf.mxu0
  %v989 = vadd.f32 %v149, %v988
  %990 = vmatmul.bf16.gmra.mxu0 %v664
  %v991 = vpop.f32.mrf.mxu0
  %v992 = vadd.f32 %v149, %v991
  %v993 = vpop.f32.mrf.mxu0
  %v994 = vadd.f32 %v149, %v993
  %995 = vmatmul.bf16.gmra.mxu0 %v667
  %v996 = vpop.f32.mrf.mxu0
  %v997 = vadd.f32 %v149, %v996
  %v998 = vpop.f32.mrf.mxu0
  %v999 = vadd.f32 %v149, %v998
  %1000 = vmatmul.bf16.gmra.mxu0 %v670
  %v1001 = vpop.f32.mrf.mxu0
  %v1002 = vadd.f32 %v149, %v1001
  %v1003 = vpop.f32.mrf.mxu0
  %v1004 = vadd.f32 %v149, %v1003
  %1005 = vmatmul.bf16.gmra.mxu0 %v673
  %v1006 = vpop.f32.mrf.mxu0
  %v1007 = vadd.f32 %v149, %v1006
  %v1008 = vpop.f32.mrf.mxu0
  %v1009 = vadd.f32 %v149, %v1008
  %1010 = vdwg.mxu0
  %v1011 = vpack.c.bf16 %v692, %v692
  %v1012 = vpack.c.bf16 %v694, %v694
  %v1013 = vpack.c.bf16 %v697, %v697
  %v1014 = vpack.c.bf16 %v699, %v699
  %v1015 = vpack.c.bf16 %v702, %v702
  %v1016 = vpack.c.bf16 %v704, %v704
  %v1017 = vpack.c.bf16 %v707, %v707
  %v1018 = vpack.c.bf16 %v709, %v709
  %v1019 = vpack.c.bf16 %v712, %v712
  %v1020 = vpack.c.bf16 %v714, %v714
  %v1021 = vpack.c.bf16 %v717, %v717
  %v1022 = vpack.c.bf16 %v719, %v719
  %v1023 = vpack.c.bf16 %v722, %v722
  %v1024 = vpack.c.bf16 %v724, %v724
  %v1025 = vpack.c.bf16 %v727, %v727
  %v1026 = vpack.c.bf16 %v729, %v729
  %v1027 = vpack.c.bf16 %v732, %v732
  %v1028 = vpack.c.bf16 %v734, %v734
  %v1029 = vpack.c.bf16 %v737, %v737
  %v1030 = vpack.c.bf16 %v739, %v739
  %v1031 = vpack.c.bf16 %v742, %v742
  %v1032 = vpack.c.bf16 %v744, %v744
  %v1033 = vpack.c.bf16 %v747, %v747
  %v1034 = vpack.c.bf16 %v749, %v749
  %v1035 = vpack.c.bf16 %v752, %v752
  %v1036 = vpack.c.bf16 %v754, %v754
  %v1037 = vpack.c.bf16 %v757, %v757
  %v1038 = vpack.c.bf16 %v759, %v759
  %v1039 = vpack.c.bf16 %v762, %v762
  %v1040 = vpack.c.bf16 %v764, %v764
  %v1041 = vpack.c.bf16 %v767, %v767
  %v1042 = vpack.c.bf16 %v769, %v769
  %v1043 = vpack.c.bf16 %v772, %v772
  %v1044 = vpack.c.bf16 %v774, %v774
  %v1045 = vpack.c.bf16 %v777, %v777
  %v1046 = vpack.c.bf16 %v779, %v779
  %v1047 = vpack.c.bf16 %v782, %v782
  %v1048 = vpack.c.bf16 %v784, %v784
  %v1049 = vpack.c.bf16 %v787, %v787
  %v1050 = vpack.c.bf16 %v789, %v789
  %v1051 = vpack.c.bf16 %v792, %v792
  %v1052 = vpack.c.bf16 %v794, %v794
  %v1053 = vpack.c.bf16 %v797, %v797
  %v1054 = vpack.c.bf16 %v799, %v799
  %v1055 = vpack.c.bf16 %v802, %v802
  %v1056 = vpack.c.bf16 %v804, %v804
  %v1057 = vpack.c.bf16 %v807, %v807
  %v1058 = vpack.c.bf16 %v809, %v809
  %v1059 = vpack.c.bf16 %v812, %v812
  %v1060 = vpack.c.bf16 %v814, %v814
  %v1061 = vpack.c.bf16 %v817, %v817
  %v1062 = vpack.c.bf16 %v819, %v819
  %v1063 = vpack.c.bf16 %v822, %v822
  %v1064 = vpack.c.bf16 %v824, %v824
  %v1065 = vpack.c.bf16 %v827, %v827
  %v1066 = vpack.c.bf16 %v829, %v829
  %v1067 = vpack.c.bf16 %v832, %v832
  %v1068 = vpack.c.bf16 %v834, %v834
  %v1069 = vpack.c.bf16 %v837, %v837
  %v1070 = vpack.c.bf16 %v839, %v839
  %v1071 = vpack.c.bf16 %v842, %v842
  %v1072 = vpack.c.bf16 %v844, %v844
  %v1073 = vpack.c.bf16 %v847, %v847
  %v1074 = vpack.c.bf16 %v849, %v849
  %v1075 = vpack.c.bf16 %v852, %v852
  %v1076 = vpack.c.bf16 %v854, %v854
  %v1077 = vpack.c.bf16 %v857, %v857
  %v1078 = vpack.c.bf16 %v859, %v859
  %v1079 = vpack.c.bf16 %v862, %v862
  %v1080 = vpack.c.bf16 %v864, %v864
  %v1081 = vpack.c.bf16 %v867, %v867
  %v1082 = vpack.c.bf16 %v869, %v869
  %v1083 = vpack.c.bf16 %v872, %v872
  %v1084 = vpack.c.bf16 %v874, %v874
  %v1085 = vpack.c.bf16 %v877, %v877
  %v1086 = vpack.c.bf16 %v879, %v879
  %v1087 = vpack.c.bf16 %v882, %v882
  %v1088 = vpack.c.bf16 %v884, %v884
  %v1089 = vpack.c.bf16 %v887, %v887
  %v1090 = vpack.c.bf16 %v889, %v889
  %v1091 = vpack.c.bf16 %v892, %v892
  %v1092 = vpack.c.bf16 %v894, %v894
  %v1093 = vpack.c.bf16 %v897, %v897
  %v1094 = vpack.c.bf16 %v899, %v899
  %v1095 = vpack.c.bf16 %v902, %v902
  %v1096 = vpack.c.bf16 %v904, %v904
  %v1097 = vpack.c.bf16 %v907, %v907
  %v1098 = vpack.c.bf16 %v909, %v909
  %v1099 = vpack.c.bf16 %v912, %v912
  %v1100 = vpack.c.bf16 %v914, %v914
  %v1101 = vpack.c.bf16 %v917, %v917
  %v1102 = vpack.c.bf16 %v919, %v919
  %v1103 = vpack.c.bf16 %v922, %v922
  %v1104 = vpack.c.bf16 %v924, %v924
  %v1105 = vpack.c.bf16 %v927, %v927
  %v1106 = vpack.c.bf16 %v929, %v929
  %v1107 = vpack.c.bf16 %v932, %v932
  %v1108 = vpack.c.bf16 %v934, %v934
  %v1109 = vpack.c.bf16 %v937, %v937
  %v1110 = vpack.c.bf16 %v939, %v939
  %v1111 = vpack.c.bf16 %v942, %v942
  %v1112 = vpack.c.bf16 %v944, %v944
  %v1113 = vpack.c.bf16 %v947, %v947
  %v1114 = vpack.c.bf16 %v949, %v949
  %v1115 = vpack.c.bf16 %v952, %v952
  %v1116 = vpack.c.bf16 %v954, %v954
  %v1117 = vpack.c.bf16 %v957, %v957
  %v1118 = vpack.c.bf16 %v959, %v959
  %v1119 = vpack.c.bf16 %v962, %v962
  %v1120 = vpack.c.bf16 %v964, %v964
  %v1121 = vpack.c.bf16 %v967, %v967
  %v1122 = vpack.c.bf16 %v969, %v969
  %v1123 = vpack.c.bf16 %v972, %v972
  %v1124 = vpack.c.bf16 %v974, %v974
  %v1125 = vpack.c.bf16 %v977, %v977
  %v1126 = vpack.c.bf16 %v979, %v979
  %v1127 = vpack.c.bf16 %v982, %v982
  %v1128 = vpack.c.bf16 %v984, %v984
  %v1129 = vpack.c.bf16 %v987, %v987
  %v1130 = vpack.c.bf16 %v989, %v989
  %v1131 = vpack.c.bf16 %v992, %v992
  %v1132 = vpack.c.bf16 %v994, %v994
  %v1133 = vpack.c.bf16 %v997, %v997
  %v1134 = vpack.c.bf16 %v999, %v999
  %v1135 = vpack.c.bf16 %v1002, %v1002
  %v1136 = vpack.c.bf16 %v1004, %v1004
  %v1137 = vpack.c.bf16 %v1007, %v1007
  %v1138 = vpack.c.bf16 %v1009, %v1009
  %vm1139 = vcmask 257024
  %1140 = vst.msk [vmem:[%s3] sm:$0xf] %vm1139, %v1011
  %1141 = vst.msk [vmem:[%s3 + $0x4] sm:$0xf] %vm1139, %v1012
  %1142 = vst.msk [vmem:[%s3 + $0x8] sm:$0xf] %vm1139, %v1013
  %1143 = vst.msk [vmem:[%s3 + $0xc] sm:$0xf] %vm1139, %v1014
  %1144 = vst.msk [vmem:[%s3 + $0x10] sm:$0xf] %vm1139, %v1015
  %1145 = vst.msk [vmem:[%s3 + $0x14] sm:$0xf] %vm1139, %v1016
  %1146 = vst.msk [vmem:[%s3 + $0x18] sm:$0xf] %vm1139, %v1017
  %1147 = vst.msk [vmem:[%s3 + $0x1c] sm:$0xf] %vm1139, %v1018
  %1148 = vst.msk [vmem:[%s3 + $0x20] sm:$0xf] %vm1139, %v1019
  %1149 = vst.msk [vmem:[%s3 + $0x24] sm:$0xf] %vm1139, %v1020
  %1150 = vst.msk [vmem:[%s3 + $0x28] sm:$0xf] %vm1139, %v1021
  %1151 = vst.msk [vmem:[%s3 + $0x2c] sm:$0xf] %vm1139, %v1022
  %1152 = vst.msk [vmem:[%s3 + $0x30] sm:$0xf] %vm1139, %v1023
  %1153 = vst.msk [vmem:[%s3 + $0x34] sm:$0xf] %vm1139, %v1024
  %1154 = vst.msk [vmem:[%s3 + $0x38] sm:$0xf] %vm1139, %v1025
  %1155 = vst.msk [vmem:[%s3 + $0x3c] sm:$0xf] %vm1139, %v1026
  %1156 = vst.msk [vmem:[%s3 + $0x40] sm:$0xf] %vm1139, %v1027
  %1157 = vst.msk [vmem:[%s3 + $0x44] sm:$0xf] %vm1139, %v1028
  %1158 = vst.msk [vmem:[%s3 + $0x48] sm:$0xf] %vm1139, %v1029
  %1159 = vst.msk [vmem:[%s3 + $0x4c] sm:$0xf] %vm1139, %v1030
  %1160 = vst.msk [vmem:[%s3 + $0x50] sm:$0xf] %vm1139, %v1031
  %1161 = vst.msk [vmem:[%s3 + $0x54] sm:$0xf] %vm1139, %v1032
  %1162 = vst.msk [vmem:[%s3 + $0x58] sm:$0xf] %vm1139, %v1033
  %1163 = vst.msk [vmem:[%s3 + $0x5c] sm:$0xf] %vm1139, %v1034
  %1164 = vst.msk [vmem:[%s3 + $0x60] sm:$0xf] %vm1139, %v1035
  %1165 = vst.msk [vmem:[%s3 + $0x64] sm:$0xf] %vm1139, %v1036
  %1166 = vst.msk [vmem:[%s3 + $0x68] sm:$0xf] %vm1139, %v1037
  %1167 = vst.msk [vmem:[%s3 + $0x6c] sm:$0xf] %vm1139, %v1038
  %1168 = vst.msk [vmem:[%s3 + $0x70] sm:$0xf] %vm1139, %v1039
  %1169 = vst.msk [vmem:[%s3 + $0x74] sm:$0xf] %vm1139, %v1040
  %1170 = vst.msk [vmem:[%s3 + $0x78] sm:$0xf] %vm1139, %v1041
  %1171 = vst.msk [vmem:[%s3 + $0x7c] sm:$0xf] %vm1139, %v1042
  %1172 = vst.msk [vmem:[%s3 + $0x80] sm:$0xf] %vm1139, %v1043
  %1173 = vst.msk [vmem:[%s3 + $0x84] sm:$0xf] %vm1139, %v1044
  %1174 = vst.msk [vmem:[%s3 + $0x88] sm:$0xf] %vm1139, %v1045
  %1175 = vst.msk [vmem:[%s3 + $0x8c] sm:$0xf] %vm1139, %v1046
  %1176 = vst.msk [vmem:[%s3 + $0x90] sm:$0xf] %vm1139, %v1047
  %1177 = vst.msk [vmem:[%s3 + $0x94] sm:$0xf] %vm1139, %v1048
  %1178 = vst.msk [vmem:[%s3 + $0x98] sm:$0xf] %vm1139, %v1049
  %1179 = vst.msk [vmem:[%s3 + $0x9c] sm:$0xf] %vm1139, %v1050
  %1180 = vst.msk [vmem:[%s3 + $0xa0] sm:$0xf] %vm1139, %v1051
  %1181 = vst.msk [vmem:[%s3 + $0xa4] sm:$0xf] %vm1139, %v1052
  %1182 = vst.msk [vmem:[%s3 + $0xa8] sm:$0xf] %vm1139, %v1053
  %1183 = vst.msk [vmem:[%s3 + $0xac] sm:$0xf] %vm1139, %v1054
  %1184 = vst.msk [vmem:[%s3 + $0xb0] sm:$0xf] %vm1139, %v1055
  %1185 = vst.msk [vmem:[%s3 + $0xb4] sm:$0xf] %vm1139, %v1056
  %1186 = vst.msk [vmem:[%s3 + $0xb8] sm:$0xf] %vm1139, %v1057
  %1187 = vst.msk [vmem:[%s3 + $0xbc] sm:$0xf] %vm1139, %v1058
  %1188 = vst.msk [vmem:[%s3 + $0xc0] sm:$0xf] %vm1139, %v1059
  %1189 = vst.msk [vmem:[%s3 + $0xc4] sm:$0xf] %vm1139, %v1060
  %1190 = vst.msk [vmem:[%s3 + $0xc8] sm:$0xf] %vm1139, %v1061
  %1191 = vst.msk [vmem:[%s3 + $0xcc] sm:$0xf] %vm1139, %v1062
  %1192 = vst.msk [vmem:[%s3 + $0xd0] sm:$0xf] %vm1139, %v1063
  %1193 = vst.msk [vmem:[%s3 + $0xd4] sm:$0xf] %vm1139, %v1064
  %1194 = vst.msk [vmem:[%s3 + $0xd8] sm:$0xf] %vm1139, %v1065
  %1195 = vst.msk [vmem:[%s3 + $0xdc] sm:$0xf] %vm1139, %v1066
  %1196 = vst.msk [vmem:[%s3 + $0xe0] sm:$0xf] %vm1139, %v1067
  %1197 = vst.msk [vmem:[%s3 + $0xe4] sm:$0xf] %vm1139, %v1068
  %1198 = vst.msk [vmem:[%s3 + $0xe8] sm:$0xf] %vm1139, %v1069
  %1199 = vst.msk [vmem:[%s3 + $0xec] sm:$0xf] %vm1139, %v1070
  %1200 = vst.msk [vmem:[%s3 + $0xf0] sm:$0xf] %vm1139, %v1071
  %1201 = vst.msk [vmem:[%s3 + $0xf4] sm:$0xf] %vm1139, %v1072
  %1202 = vst.msk [vmem:[%s3 + $0xf8] sm:$0xf] %vm1139, %v1073
  %1203 = vst.msk [vmem:[%s3 + $0xfc] sm:$0xf] %vm1139, %v1074
  %1204 = vst.msk [vmem:[%s3 + $0x100] sm:$0xf] %vm1139, %v1075
  %1205 = vst.msk [vmem:[%s3 + $0x104] sm:$0xf] %vm1139, %v1076
  %1206 = vst.msk [vmem:[%s3 + $0x108] sm:$0xf] %vm1139, %v1077
  %1207 = vst.msk [vmem:[%s3 + $0x10c] sm:$0xf] %vm1139, %v1078
  %1208 = vst.msk [vmem:[%s3 + $0x110] sm:$0xf] %vm1139, %v1079
  %1209 = vst.msk [vmem:[%s3 + $0x114] sm:$0xf] %vm1139, %v1080
  %1210 = vst.msk [vmem:[%s3 + $0x118] sm:$0xf] %vm1139, %v1081
  %1211 = vst.msk [vmem:[%s3 + $0x11c] sm:$0xf] %vm1139, %v1082
  %1212 = vst.msk [vmem:[%s3 + $0x120] sm:$0xf] %vm1139, %v1083
  %1213 = vst.msk [vmem:[%s3 + $0x124] sm:$0xf] %vm1139, %v1084
  %1214 = vst.msk [vmem:[%s3 + $0x128] sm:$0xf] %vm1139, %v1085
  %1215 = vst.msk [vmem:[%s3 + $0x12c] sm:$0xf] %vm1139, %v1086
  %1216 = vst.msk [vmem:[%s3 + $0x130] sm:$0xf] %vm1139, %v1087
  %1217 = vst.msk [vmem:[%s3 + $0x134] sm:$0xf] %vm1139, %v1088
  %1218 = vst.msk [vmem:[%s3 + $0x138] sm:$0xf] %vm1139, %v1089
  %1219 = vst.msk [vmem:[%s3 + $0x13c] sm:$0xf] %vm1139, %v1090
  %1220 = vst.msk [vmem:[%s3 + $0x140] sm:$0xf] %vm1139, %v1091
  %1221 = vst.msk [vmem:[%s3 + $0x144] sm:$0xf] %vm1139, %v1092
  %1222 = vst.msk [vmem:[%s3 + $0x148] sm:$0xf] %vm1139, %v1093
  %1223 = vst.msk [vmem:[%s3 + $0x14c] sm:$0xf] %vm1139, %v1094
  %1224 = vst.msk [vmem:[%s3 + $0x150] sm:$0xf] %vm1139, %v1095
  %1225 = vst.msk [vmem:[%s3 + $0x154] sm:$0xf] %vm1139, %v1096
  %1226 = vst.msk [vmem:[%s3 + $0x158] sm:$0xf] %vm1139, %v1097
  %1227 = vst.msk [vmem:[%s3 + $0x15c] sm:$0xf] %vm1139, %v1098
  %1228 = vst.msk [vmem:[%s3 + $0x160] sm:$0xf] %vm1139, %v1099
  %1229 = vst.msk [vmem:[%s3 + $0x164] sm:$0xf] %vm1139, %v1100
  %1230 = vst.msk [vmem:[%s3 + $0x168] sm:$0xf] %vm1139, %v1101
  %1231 = vst.msk [vmem:[%s3 + $0x16c] sm:$0xf] %vm1139, %v1102
  %1232 = vst.msk [vmem:[%s3 + $0x170] sm:$0xf] %vm1139, %v1103
  %1233 = vst.msk [vmem:[%s3 + $0x174] sm:$0xf] %vm1139, %v1104
  %1234 = vst.msk [vmem:[%s3 + $0x178] sm:$0xf] %vm1139, %v1105
  %1235 = vst.msk [vmem:[%s3 + $0x17c] sm:$0xf] %vm1139, %v1106
  %1236 = vst.msk [vmem:[%s3 + $0x180] sm:$0xf] %vm1139, %v1107
  %1237 = vst.msk [vmem:[%s3 + $0x184] sm:$0xf] %vm1139, %v1108
  %1238 = vst.msk [vmem:[%s3 + $0x188] sm:$0xf] %vm1139, %v1109
  %1239 = vst.msk [vmem:[%s3 + $0x18c] sm:$0xf] %vm1139, %v1110
  %1240 = vst.msk [vmem:[%s3 + $0x190] sm:$0xf] %vm1139, %v1111
  %1241 = vst.msk [vmem:[%s3 + $0x194] sm:$0xf] %vm1139, %v1112
  %1242 = vst.msk [vmem:[%s3 + $0x198] sm:$0xf] %vm1139, %v1113
  %1243 = vst.msk [vmem:[%s3 + $0x19c] sm:$0xf] %vm1139, %v1114
  %1244 = vst.msk [vmem:[%s3 + $0x1a0] sm:$0xf] %vm1139, %v1115
  %1245 = vst.msk [vmem:[%s3 + $0x1a4] sm:$0xf] %vm1139, %v1116
  %1246 = vst.msk [vmem:[%s3 + $0x1a8] sm:$0xf] %vm1139, %v1117
  %1247 = vst.msk [vmem:[%s3 + $0x1ac] sm:$0xf] %vm1139, %v1118
  %1248 = vst.msk [vmem:[%s3 + $0x1b0] sm:$0xf] %vm1139, %v1119
  %1249 = vst.msk [vmem:[%s3 + $0x1b4] sm:$0xf] %vm1139, %v1120
  %1250 = vst.msk [vmem:[%s3 + $0x1b8] sm:$0xf] %vm1139, %v1121
  %1251 = vst.msk [vmem:[%s3 + $0x1bc] sm:$0xf] %vm1139, %v1122
  %1252 = vst.msk [vmem:[%s3 + $0x1c0] sm:$0xf] %vm1139, %v1123
  %1253 = vst.msk [vmem:[%s3 + $0x1c4] sm:$0xf] %vm1139, %v1124
  %1254 = vst.msk [vmem:[%s3 + $0x1c8] sm:$0xf] %vm1139, %v1125
  %1255 = vst.msk [vmem:[%s3 + $0x1cc] sm:$0xf] %vm1139, %v1126
  %1256 = vst.msk [vmem:[%s3 + $0x1d0] sm:$0xf] %vm1139, %v1127
  %1257 = vst.msk [vmem:[%s3 + $0x1d4] sm:$0xf] %vm1139, %v1128
  %1258 = vst.msk [vmem:[%s3 + $0x1d8] sm:$0xf] %vm1139, %v1129
  %1259 = vst.msk [vmem:[%s3 + $0x1dc] sm:$0xf] %vm1139, %v1130
  %1260 = vst.msk [vmem:[%s3 + $0x1e0] sm:$0xf] %vm1139, %v1131
  %1261 = vst.msk [vmem:[%s3 + $0x1e4] sm:$0xf] %vm1139, %v1132
  %1262 = vst.msk [vmem:[%s3 + $0x1e8] sm:$0xf] %vm1139, %v1133
  %1263 = vst.msk [vmem:[%s3 + $0x1ec] sm:$0xf] %vm1139, %v1134
  %1264 = vst.msk [vmem:[%s3 + $0x1f0] sm:$0xf] %vm1139, %v1135
  %1265 = vst.msk [vmem:[%s3 + $0x1f4] sm:$0xf] %vm1139, %v1136
  %1266 = vst.msk [vmem:[%s3 + $0x1f8] sm:$0xf] %vm1139, %v1137
  %1267 = vst.msk [vmem:[%s3 + $0x1fc] sm:$0xf] %vm1139, %v1138
  // Predicated region
  $region14: #{tpu_custom_call.1} parent=0 // pred_check
    _
  $region15: #{tpu_custom_call.1} parent=0 // pred_check_branch
    %1269 = sbr.rel (0) target = $region17
  $region16: #{tpu_custom_call.1} parent=0 // pred_region
    _
  $region17: #{tpu_custom_call.1} parent=0 // pred_fallthru
    _
  // Predicated region
  $region18: #{tpu_custom_call.1} parent=0 // pred_check
    _
  $region19: #{tpu_custom_call.1} parent=0 // pred_check_branch
    %1271 = sbr.rel (0) target = $region21
  $region20: #{tpu_custom_call.1} parent=0 // pred_region
    _
  $region21: #{tpu_custom_call.1} parent=0 // pred_fallthru
    _

</llo_original>
